<compile_context>
chip_gen: v7x
topology: tpu7x:2x2x1
jax: 0.10.0
libtpu: 0.0.40
codegen_flags: <defaults>
</compile_context>

<pallas_src>
import functools

import jax
import jax.numpy as jnp
from jax.experimental import pallas as pl
from jax.experimental.pallas import tpu as pltpu


def _triplet_g2l_kernel(batch_ref, g1_ref, g2_ref, h1_ref, h2_ref, out_ref,
                        npos_acc, pos1_acc, tot1_acc, pos2_acc, tot2_acc,
                        *, eps, num_nodes, mask_tail):
    step = pl.program_id(0)

    @pl.when(step == 0)
    def _init():
        npos_acc[...] = jnp.zeros_like(npos_acc)
        pos1_acc[...] = jnp.zeros_like(pos1_acc)
        tot1_acc[...] = jnp.zeros_like(tot1_acc)
        pos2_acc[...] = jnp.zeros_like(pos2_acc)
        tot2_acc[...] = jnp.zeros_like(tot2_acc)

    num_graphs = g1_ref.shape[0]
    tile_n = h1_ref.shape[0]
    dim = h1_ref.shape[1]

    g1 = g1_ref[...]                       # [G, D]  (resident across the grid)
    g2 = g2_ref[...]                       # [G, D]
    h1 = h1_ref[...]                       # [TN, D] (node tile)
    h2 = h2_ref[...]                       # [TN, D]
    bid = batch_ref[...]                   # [1, TN] int32 graph id per node

    # pos_mask[g, n] = (batch[n] == g); realizes scatter(eye(N), batch) on the
    # fly without ever materializing the N x N identity.
    gid = jax.lax.broadcasted_iota(jnp.int32, (num_graphs, tile_n), 0)
    pos = bid == gid                                                 # [G, TN]

    # Validity mask for the ragged last tile: padded columns hold undefined
    # data and must not contribute. Statically elided when N % TN == 0.
    if mask_tail:
        col = jax.lax.broadcasted_iota(jnp.int32, (num_graphs, tile_n), 1)
        valid = col < (num_nodes - step * tile_n)                    # [G, TN]
        pos = jnp.logical_and(pos, valid)
    posf = pos.astype(jnp.float32)

    # Euclidean distance via the MXU:  ||g - h||^2 = ||g||^2 + ||h||^2 - 2 g.h
    g1n = jnp.sum(g1 * g1, axis=-1, keepdims=True)                   # [G, 1]
    g2n = jnp.sum(g2 * g2, axis=-1, keepdims=True)                   # [G, 1]
    ones_row = jnp.ones((1, dim), jnp.float32)
    dn = (((1,), (1,)), ((), ()))          # contract last dims (q @ k.T form)
    h1n = jax.lax.dot_general(ones_row, h1 * h1, dn,
                              preferred_element_type=jnp.float32)    # [1, TN]
    h2n = jax.lax.dot_general(ones_row, h2 * h2, dn,
                              preferred_element_type=jnp.float32)    # [1, TN]
    gh12 = jax.lax.dot_general(g1, h2, dn,
                               preferred_element_type=jnp.float32)   # [G, TN]
    gh21 = jax.lax.dot_general(g2, h1, dn,
                               preferred_element_type=jnp.float32)   # [G, TN]

    dist1 = jnp.sqrt(jnp.maximum(g1n + h2n - 2.0 * gh12, 0.0))   # cdist(g1,h2)
    dist2 = jnp.sqrt(jnp.maximum(g2n + h1n - 2.0 * gh21, 0.0))   # cdist(g2,h1)
    if mask_tail:
        # Zero padded columns (their undefined data could be inf/NaN).
        dist1 = jnp.where(valid, dist1, 0.0)
        dist2 = jnp.where(valid, dist2, 0.0)

    npos_acc[...] += jnp.sum(posf, axis=1, keepdims=True)
    pos1_acc[...] += jnp.sum(posf * dist1, axis=1, keepdims=True)
    tot1_acc[...] += jnp.sum(dist1, axis=1, keepdims=True)
    pos2_acc[...] += jnp.sum(posf * dist2, axis=1, keepdims=True)
    tot2_acc[...] += jnp.sum(dist2, axis=1, keepdims=True)

    @pl.when(step == pl.num_programs(0) - 1)
    def _finalize():
        num_pos = npos_acc[...]                        # [G, 1]
        num_neg = float(num_nodes) - num_pos           # every node is pos or neg
        ps1, ps2 = pos1_acc[...], pos2_acc[...]
        ns1 = tot1_acc[...] - ps1                      # (1-pos)*d == d - pos*d
        ns2 = tot2_acc[...] - ps2
        l1 = jnp.maximum(ps1 / num_pos - ns1 / num_neg + eps, 0.0)   # hinge
        l2 = jnp.maximum(ps2 / num_pos - ns2 / num_neg + eps, 0.0)
        # 0.5 * (mean_g l1 + mean_g l2), folded into one reduce + one scale.
        out_ref[...] = (jnp.sum(l1 + l2, axis=0, keepdims=True)
                        * (0.5 / num_graphs))


def _pick_tile_n(num_nodes, num_graphs, dim, block_n):
    """Node-tile size: biggest that comfortably fits VMEM, multiple of 128."""
    if block_n is not None:
        if block_n < num_nodes and block_n % 128 != 0:
            raise ValueError("block_n must be a multiple of 128 when tiling N")
        return num_nodes if num_nodes <= block_n else block_n
    g_pad = max(8, ((num_graphs + 7) // 8) * 8)
    # h1 + h2 streams, double-buffered, f32.
    tn_stream = (8 * 1024 * 1024) // (2 * 2 * 4 * dim)
    # ~6 live [G, TN] f32 intermediates (dist1/dist2/masks/products).
    tn_interm = (8 * 1024 * 1024) // (6 * 4 * g_pad)
    cap = max(128, min(tn_stream, tn_interm, 4096))
    if num_nodes <= cap:
        return num_nodes
    return (cap // 128) * 128


def triplet_loss_g2l(h1, g1, h2, g2, batch, eps, *, block_n=None):
    """JAX/Pallas equivalent of TripletLossG2L.forward."""
    h1 = h1.astype(jnp.float32)
    h2 = h2.astype(jnp.float32)
    g1 = g1.astype(jnp.float32)
    g2 = g2.astype(jnp.float32)

    num_nodes, dim = h1.shape
    num_graphs = g1.shape[0]

    tn = _pick_tile_n(num_nodes, num_graphs, dim, block_n)
    n_tiles = pl.cdiv(num_nodes, tn)
    mask_tail = (num_nodes % tn) != 0

    batch2d = batch.astype(jnp.int32).reshape(1, num_nodes)

    kernel = functools.partial(_triplet_g2l_kernel,
                               eps=float(eps), num_nodes=num_nodes,
                               mask_tail=mask_tail)

    out = pl.pallas_call(
        kernel,
        out_shape=jax.ShapeDtypeStruct((1, 1), jnp.float32),
        grid=(n_tiles,),
        in_specs=[
            pl.BlockSpec((1, tn), lambda i: (0, i)),             # batch ids
            pl.BlockSpec((num_graphs, dim), lambda i: (0, 0)),   # g1 (resident)
            pl.BlockSpec((num_graphs, dim), lambda i: (0, 0)),   # g2 (resident)
            pl.BlockSpec((tn, dim), lambda i: (i, 0)),           # h1 node tile
            pl.BlockSpec((tn, dim), lambda i: (i, 0)),           # h2 node tile
        ],
        out_specs=pl.BlockSpec((1, 1), lambda i: (0, 0)),
        scratch_shapes=[pltpu.VMEM((num_graphs, 1), jnp.float32)
                        for _ in range(5)],
        compiler_params=pltpu.CompilerParams(
            dimension_semantics=("arbitrary",)),
    )(batch2d, g1, g2, h1, h2)
    return out[0, 0]


def _reference(h1, g1, h2, g2, batch, eps):
    """Pure-JAX mirror of the PyTorch module, for the correctness check."""
    num_graphs = g1.shape[0]
    pos_mask = (batch[None, :] == jnp.arange(num_graphs)[:, None]).astype(jnp.float32)
    neg_mask = 1.0 - pos_mask
    num_pos = pos_mask.sum(axis=1)
    num_neg = neg_mask.sum(axis=1)

    def one_view(anchor, samples):
        diff = anchor[:, None, :] - samples[None, :, :]
        dist = jnp.sqrt(jnp.sum(diff * diff, axis=-1))           # [G, N]
        pos_d = jnp.sum(pos_mask * dist, axis=1)
        neg_d = jnp.sum(neg_mask * dist, axis=1)
        loss = pos_d / num_pos - neg_d / num_neg + eps
        return jnp.mean(jnp.where(loss > 0, loss, 0.0))

    return (one_view(g1, h2) + one_view(g2, h1)) * 0.5


if __name__ == "__main__":
    key = jax.random.PRNGKey(0)
    eps = 0.1

    # --- small config: N=8 nodes, D=32, G=2 graphs (single-tile path) -------
    N, D, G = 8, 32, 2
    k1, k2, k3, k4 = jax.random.split(key, 4)
    h1 = jax.random.normal(k1, (N, D), dtype=jnp.float32)   # node emb, view 1
    h2 = jax.random.normal(k2, (N, D), dtype=jnp.float32)   # node emb, view 2
    g1 = jax.random.normal(k3, (G, D), dtype=jnp.float32)   # graph emb, view 1
    g2 = jax.random.normal(k4, (G, D), dtype=jnp.float32)   # graph emb, view 2
    batch = jnp.array([0, 0, 0, 0, 1, 1, 1, 1], dtype=jnp.int32)

    out = jax.block_until_ready(triplet_loss_g2l(h1, g1, h2, g2, batch, eps))
    ref = _reference(h1, g1, h2, g2, batch, eps)
    assert jnp.allclose(out, ref, rtol=1e-4, atol=1e-4), (out, ref)

    # --- multi-tile config with a ragged last tile: exercises the N-grid
    #     accumulators and the in-kernel validity mask (300 nodes / 128-tile) -
    N2, D2, G2 = 300, 32, 3
    k5, k6, k7, k8 = jax.random.split(jax.random.PRNGKey(0), 4)
    h1b = jax.random.normal(k5, (N2, D2), dtype=jnp.float32)
    h2b = jax.random.normal(k6, (N2, D2), dtype=jnp.float32)
    g1b = jax.random.normal(k7, (G2, D2), dtype=jnp.float32)
    g2b = jax.random.normal(k8, (G2, D2), dtype=jnp.float32)
    batch_b = jnp.concatenate([jnp.full((150,), 0, jnp.int32),
                               jnp.full((100,), 1, jnp.int32),
                               jnp.full((50,), 2, jnp.int32)])
    out_b = jax.block_until_ready(
        triplet_loss_g2l(h1b, g1b, h2b, g2b, batch_b, eps, block_n=128))
    ref_b = _reference(h1b, g1b, h2b, g2b, batch_b, eps)
    assert jnp.allclose(out_b, ref_b, rtol=1e-4, atol=1e-4), (out_b, ref_b)

    # --- multi-tile, exactly divisible: exercises the mask-elided fast path --
    N3, D3, G3 = 256, 32, 4
    k9, k10, k11, k12 = jax.random.split(jax.random.PRNGKey(1), 4)
    h1c = jax.random.normal(k9, (N3, D3), dtype=jnp.float32)
    h2c = jax.random.normal(k10, (N3, D3), dtype=jnp.float32)
    g1c = jax.random.normal(k11, (G3, D3), dtype=jnp.float32)
    g2c = jax.random.normal(k12, (G3, D3), dtype=jnp.float32)
    batch_c = jnp.repeat(jnp.arange(G3, dtype=jnp.int32), N3 // G3)
    out_c = jax.block_until_ready(
        triplet_loss_g2l(h1c, g1c, h2c, g2c, batch_c, eps, block_n=128))
    ref_c = _reference(h1c, g1c, h2c, g2c, batch_c, eps)
    assert jnp.allclose(out_c, ref_c, rtol=1e-4, atol=1e-4), (out_c, ref_c)

    print("KERNEL_OK")
</pallas_src>

<mosaic_0001>
module attributes {stable_mosaic.version = 11 : i64} {
  func.func @_triplet_g2l_kernel(%arg0: i32, %arg1: memref<1x8xi32, #tpu.memory_space<vmem>>, %arg2: memref<2x32xf32, #tpu.memory_space<vmem>>, %arg3: memref<2x32xf32, #tpu.memory_space<vmem>>, %arg4: memref<8x32xf32, #tpu.memory_space<vmem>>, %arg5: memref<8x32xf32, #tpu.memory_space<vmem>>, %arg6: memref<1x1xf32, #tpu.memory_space<vmem>>, %arg7: memref<2x1xf32, #tpu.memory_space<vmem>>, %arg8: memref<2x1xf32, #tpu.memory_space<vmem>>, %arg9: memref<2x1xf32, #tpu.memory_space<vmem>>, %arg10: memref<2x1xf32, #tpu.memory_space<vmem>>, %arg11: memref<2x1xf32, #tpu.memory_space<vmem>>) attributes {dimension_semantics = [#tpu.dimension_semantics<arbitrary>], iteration_bounds = array<i64: 1>, scalar_prefetch = 0 : i64, scratch_operands = 5 : i64, tpu.core_type = #tpu.core_type<tc>, window_params = [{transform_indices = @transform_0, window_bounds = array<i64: 1, 8>}, {pipeline_mode = #tpu.pipeline_mode<synchronous>, transform_indices = @transform_1, window_bounds = array<i64: 2, 32>}, {pipeline_mode = #tpu.pipeline_mode<synchronous>, transform_indices = @transform_2, window_bounds = array<i64: 2, 32>}, {transform_indices = @transform_3, window_bounds = array<i64: 8, 32>}, {transform_indices = @transform_4, window_bounds = array<i64: 8, 32>}, {pipeline_mode = #tpu.pipeline_mode<synchronous>, transform_indices = @transform_5, window_bounds = array<i64: 1, 1>}]} {
    %c0_i32 = arith.constant 0 : i32
    %0 = arith.cmpi eq, %arg0, %c0_i32 : i32
    %1 = arith.extui %0 : i1 to i32
    %c0_i32_0 = arith.constant 0 : i32
    %2 = arith.cmpi ne, %1, %c0_i32_0 : i32
    scf.if %2 {
      %cst_47 = arith.constant 0.000000e+00 : f32
      %74 = vector.broadcast %cst_47 : f32 to vector<2x1xf32>
      %c0_48 = arith.constant 0 : index
      %c0_49 = arith.constant 0 : index
      %75 = vector.load %arg7[%c0_48, %c0_49] : memref<2x1xf32, #tpu.memory_space<vmem>>, vector<2x1xf32>
      tpu.vector_store %arg7[%c0_48, %c0_49], %74 {strides = array<i32>} : memref<2x1xf32, #tpu.memory_space<vmem>>, vector<2x1xf32>,
      %cst_50 = arith.constant 0.000000e+00 : f32
      %76 = vector.broadcast %cst_50 : f32 to vector<2x1xf32>
      %c0_51 = arith.constant 0 : index
      %c0_52 = arith.constant 0 : index
      %77 = vector.load %arg8[%c0_51, %c0_52] : memref<2x1xf32, #tpu.memory_space<vmem>>, vector<2x1xf32>
      tpu.vector_store %arg8[%c0_51, %c0_52], %76 {strides = array<i32>} : memref<2x1xf32, #tpu.memory_space<vmem>>, vector<2x1xf32>,
      %cst_53 = arith.constant 0.000000e+00 : f32
      %78 = vector.broadcast %cst_53 : f32 to vector<2x1xf32>
      %c0_54 = arith.constant 0 : index
      %c0_55 = arith.constant 0 : index
      %79 = vector.load %arg9[%c0_54, %c0_55] : memref<2x1xf32, #tpu.memory_space<vmem>>, vector<2x1xf32>
      tpu.vector_store %arg9[%c0_54, %c0_55], %78 {strides = array<i32>} : memref<2x1xf32, #tpu.memory_space<vmem>>, vector<2x1xf32>,
      %cst_56 = arith.constant 0.000000e+00 : f32
      %80 = vector.broadcast %cst_56 : f32 to vector<2x1xf32>
      %c0_57 = arith.constant 0 : index
      %c0_58 = arith.constant 0 : index
      %81 = vector.load %arg10[%c0_57, %c0_58] : memref<2x1xf32, #tpu.memory_space<vmem>>, vector<2x1xf32>
      tpu.vector_store %arg10[%c0_57, %c0_58], %80 {strides = array<i32>} : memref<2x1xf32, #tpu.memory_space<vmem>>, vector<2x1xf32>,
      %cst_59 = arith.constant 0.000000e+00 : f32
      %82 = vector.broadcast %cst_59 : f32 to vector<2x1xf32>
      %c0_60 = arith.constant 0 : index
      %c0_61 = arith.constant 0 : index
      %83 = vector.load %arg11[%c0_60, %c0_61] : memref<2x1xf32, #tpu.memory_space<vmem>>, vector<2x1xf32>
      tpu.vector_store %arg11[%c0_60, %c0_61], %82 {strides = array<i32>} : memref<2x1xf32, #tpu.memory_space<vmem>>, vector<2x1xf32>,
    } else {
    }
    %c0 = arith.constant 0 : index
    %c0_1 = arith.constant 0 : index
    %3 = vector.load %arg2[%c0, %c0_1] : memref<2x32xf32, #tpu.memory_space<vmem>>, vector<2x32xf32>
    %c0_2 = arith.constant 0 : index
    %c0_3 = arith.constant 0 : index
    %4 = vector.load %arg3[%c0_2, %c0_3] : memref<2x32xf32, #tpu.memory_space<vmem>>, vector<2x32xf32>
    %c0_4 = arith.constant 0 : index
    %c0_5 = arith.constant 0 : index
    %5 = vector.load %arg4[%c0_4, %c0_5] : memref<8x32xf32, #tpu.memory_space<vmem>>, vector<8x32xf32>
    %c0_6 = arith.constant 0 : index
    %c0_7 = arith.constant 0 : index
    %6 = vector.load %arg5[%c0_6, %c0_7] : memref<8x32xf32, #tpu.memory_space<vmem>>, vector<8x32xf32>
    %c0_8 = arith.constant 0 : index
    %c0_9 = arith.constant 0 : index
    %7 = vector.load %arg1[%c0_8, %c0_9] : memref<1x8xi32, #tpu.memory_space<vmem>>, vector<1x8xi32>
    %8 = tpu.iota {dimensions = array<i32: 0>} : vector<2x8xi32>
    %9 = vector.broadcast %7 : vector<1x8xi32> to vector<2x8xi32>
    %10 = arith.cmpi eq, %9, %8 : vector<2x8xi32>
    %11 = arith.extui %10 : vector<2x8xi1> to vector<2x8xi32>
    %12 = arith.sitofp %11 : vector<2x8xi32> to vector<2x8xf32>
    %13 = arith.mulf %3, %3 : vector<2x32xf32>
    %cst = arith.constant dense<0.000000e+00> : vector<2xf32>
    %14 = vector.multi_reduction <add>, %13, %cst [1] : vector<2x32xf32> to vector<2xf32>
    %15 = vector.shape_cast %14 : vector<2xf32> to vector<2x1xf32>
    %16 = arith.mulf %4, %4 : vector<2x32xf32>
    %cst_10 = arith.constant dense<0.000000e+00> : vector<2xf32>
    %17 = vector.multi_reduction <add>, %16, %cst_10 [1] : vector<2x32xf32> to vector<2xf32>
    %18 = vector.shape_cast %17 : vector<2xf32> to vector<2x1xf32>
    %cst_11 = arith.constant 1.000000e+00 : f32
    %19 = vector.broadcast %cst_11 : f32 to vector<1x32xf32>
    %20 = arith.mulf %5, %5 : vector<8x32xf32>
    %cst_12 = arith.constant dense<0.000000e+00> : vector<1x8xf32>
    %21 = tpu.matmul %19, %20, %cst_12 {dimension_numbers = #tpu.dot_dimension_numbers<[1], [1], [0], [0], [0, 0, 1, 0], [], []>} : vector<1x32xf32>, vector<8x32xf32>, vector<1x8xf32> -> vector<1x8xf32>
    %22 = arith.mulf %6, %6 : vector<8x32xf32>
    %cst_13 = arith.constant dense<0.000000e+00> : vector<1x8xf32>
    %23 = tpu.matmul %19, %22, %cst_13 {dimension_numbers = #tpu.dot_dimension_numbers<[1], [1], [0], [0], [0, 0, 1, 0], [], []>} : vector<1x32xf32>, vector<8x32xf32>, vector<1x8xf32> -> vector<1x8xf32>
    %cst_14 = arith.constant dense<0.000000e+00> : vector<2x8xf32>
    %24 = tpu.matmul %3, %6, %cst_14 {dimension_numbers = #tpu.dot_dimension_numbers<[1], [1], [0], [0], [0, 0, 1, 0], [], []>} : vector<2x32xf32>, vector<8x32xf32>, vector<2x8xf32> -> vector<2x8xf32>
    %cst_15 = arith.constant dense<0.000000e+00> : vector<2x8xf32>
    %25 = tpu.matmul %4, %5, %cst_15 {dimension_numbers = #tpu.dot_dimension_numbers<[1], [1], [0], [0], [0, 0, 1, 0], [], []>} : vector<2x32xf32>, vector<8x32xf32>, vector<2x8xf32> -> vector<2x8xf32>
    %26 = vector.broadcast %15 : vector<2x1xf32> to vector<2x8xf32>
    %27 = vector.broadcast %23 : vector<1x8xf32> to vector<2x8xf32>
    %28 = arith.addf %26, %27 : vector<2x8xf32>
    %cst_16 = arith.constant 2.000000e+00 : f32
    %29 = vector.broadcast %cst_16 : f32 to vector<2x8xf32>
    %30 = arith.mulf %29, %24 : vector<2x8xf32>
    %31 = arith.subf %28, %30 : vector<2x8xf32>
    %cst_17 = arith.constant 0.000000e+00 : f32
    %32 = vector.broadcast %cst_17 : f32 to vector<2x8xf32>
    %33 = arith.maximumf %31, %32 : vector<2x8xf32>
    %34 = math.sqrt %33 : vector<2x8xf32>
    %35 = vector.broadcast %18 : vector<2x1xf32> to vector<2x8xf32>
    %36 = vector.broadcast %21 : vector<1x8xf32> to vector<2x8xf32>
    %37 = arith.addf %35, %36 : vector<2x8xf32>
    %cst_18 = arith.constant 2.000000e+00 : f32
    %38 = vector.broadcast %cst_18 : f32 to vector<2x8xf32>
    %39 = arith.mulf %38, %25 : vector<2x8xf32>
    %40 = arith.subf %37, %39 : vector<2x8xf32>
    %cst_19 = arith.constant 0.000000e+00 : f32
    %41 = vector.broadcast %cst_19 : f32 to vector<2x8xf32>
    %42 = arith.maximumf %40, %41 : vector<2x8xf32>
    %43 = math.sqrt %42 : vector<2x8xf32>
    %c0_20 = arith.constant 0 : index
    %c0_21 = arith.constant 0 : index
    %44 = vector.load %arg7[%c0_20, %c0_21] : memref<2x1xf32, #tpu.memory_space<vmem>>, vector<2x1xf32>
    %cst_22 = arith.constant dense<0.000000e+00> : vector<2xf32>
    %45 = vector.multi_reduction <add>, %12, %cst_22 [1] : vector<2x8xf32> to vector<2xf32>
    %46 = vector.shape_cast %45 : vector<2xf32> to vector<2x1xf32>
    %47 = arith.addf %44, %46 : vector<2x1xf32>
    %c0_23 = arith.constant 0 : index
    %c0_24 = arith.constant 0 : index
    %48 = vector.load %arg7[%c0_23, %c0_24] : memref<2x1xf32, #tpu.memory_space<vmem>>, vector<2x1xf32>
    tpu.vector_store %arg7[%c0_23, %c0_24], %47 {strides = array<i32>} : memref<2x1xf32, #tpu.memory_space<vmem>>, vector<2x1xf32>,
    %c0_25 = arith.constant 0 : index
    %c0_26 = arith.constant 0 : index
    %49 = vector.load %arg8[%c0_25, %c0_26] : memref<2x1xf32, #tpu.memory_space<vmem>>, vector<2x1xf32>
    %50 = arith.mulf %12, %34 : vector<2x8xf32>
    %cst_27 = arith.constant dense<0.000000e+00> : vector<2xf32>
    %51 = vector.multi_reduction <add>, %50, %cst_27 [1] : vector<2x8xf32> to vector<2xf32>
    %52 = vector.shape_cast %51 : vector<2xf32> to vector<2x1xf32>
    %53 = arith.addf %49, %52 : vector<2x1xf32>
    %c0_28 = arith.constant 0 : index
    %c0_29 = arith.constant 0 : index
    %54 = vector.load %arg8[%c0_28, %c0_29] : memref<2x1xf32, #tpu.memory_space<vmem>>, vector<2x1xf32>
    tpu.vector_store %arg8[%c0_28, %c0_29], %53 {strides = array<i32>} : memref<2x1xf32, #tpu.memory_space<vmem>>, vector<2x1xf32>,
    %c0_30 = arith.constant 0 : index
    %c0_31 = arith.constant 0 : index
    %55 = vector.load %arg9[%c0_30, %c0_31] : memref<2x1xf32, #tpu.memory_space<vmem>>, vector<2x1xf32>
    %cst_32 = arith.constant dense<0.000000e+00> : vector<2xf32>
    %56 = vector.multi_reduction <add>, %34, %cst_32 [1] : vector<2x8xf32> to vector<2xf32>
    %57 = vector.shape_cast %56 : vector<2xf32> to vector<2x1xf32>
    %58 = arith.addf %55, %57 : vector<2x1xf32>
    %c0_33 = arith.constant 0 : index
    %c0_34 = arith.constant 0 : index
    %59 = vector.load %arg9[%c0_33, %c0_34] : memref<2x1xf32, #tpu.memory_space<vmem>>, vector<2x1xf32>
    tpu.vector_store %arg9[%c0_33, %c0_34], %58 {strides = array<i32>} : memref<2x1xf32, #tpu.memory_space<vmem>>, vector<2x1xf32>,
    %c0_35 = arith.constant 0 : index
    %c0_36 = arith.constant 0 : index
    %60 = vector.load %arg10[%c0_35, %c0_36] : memref<2x1xf32, #tpu.memory_space<vmem>>, vector<2x1xf32>
    %61 = arith.mulf %12, %43 : vector<2x8xf32>
    %cst_37 = arith.constant dense<0.000000e+00> : vector<2xf32>
    %62 = vector.multi_reduction <add>, %61, %cst_37 [1] : vector<2x8xf32> to vector<2xf32>
    %63 = vector.shape_cast %62 : vector<2xf32> to vector<2x1xf32>
    %64 = arith.addf %60, %63 : vector<2x1xf32>
    %c0_38 = arith.constant 0 : index
    %c0_39 = arith.constant 0 : index
    %65 = vector.load %arg10[%c0_38, %c0_39] : memref<2x1xf32, #tpu.memory_space<vmem>>, vector<2x1xf32>
    tpu.vector_store %arg10[%c0_38, %c0_39], %64 {strides = array<i32>} : memref<2x1xf32, #tpu.memory_space<vmem>>, vector<2x1xf32>,
    %c0_40 = arith.constant 0 : index
    %c0_41 = arith.constant 0 : index
    %66 = vector.load %arg11[%c0_40, %c0_41] : memref<2x1xf32, #tpu.memory_space<vmem>>, vector<2x1xf32>
    %cst_42 = arith.constant dense<0.000000e+00> : vector<2xf32>
    %67 = vector.multi_reduction <add>, %43, %cst_42 [1] : vector<2x8xf32> to vector<2xf32>
    %68 = vector.shape_cast %67 : vector<2xf32> to vector<2x1xf32>
    %69 = arith.addf %66, %68 : vector<2x1xf32>
    %c0_43 = arith.constant 0 : index
    %c0_44 = arith.constant 0 : index
    %70 = vector.load %arg11[%c0_43, %c0_44] : memref<2x1xf32, #tpu.memory_space<vmem>>, vector<2x1xf32>
    tpu.vector_store %arg11[%c0_43, %c0_44], %69 {strides = array<i32>} : memref<2x1xf32, #tpu.memory_space<vmem>>, vector<2x1xf32>,
    %c0_i32_45 = arith.constant 0 : i32
    %71 = arith.cmpi eq, %arg0, %c0_i32_45 : i32
    %72 = arith.extui %71 : i1 to i32
    %c0_i32_46 = arith.constant 0 : i32
    %73 = arith.cmpi ne, %72, %c0_i32_46 : i32
    scf.if %73 {
      %c0_47 = arith.constant 0 : index
      %c0_48 = arith.constant 0 : index
      %74 = vector.load %arg7[%c0_47, %c0_48] : memref<2x1xf32, #tpu.memory_space<vmem>>, vector<2x1xf32>
      %cst_49 = arith.constant 8.000000e+00 : f32
      %75 = vector.broadcast %cst_49 : f32 to vector<2x1xf32>
      %76 = arith.subf %75, %74 : vector<2x1xf32>
      %c0_50 = arith.constant 0 : index
      %c0_51 = arith.constant 0 : index
      %77 = vector.load %arg8[%c0_50, %c0_51] : memref<2x1xf32, #tpu.memory_space<vmem>>, vector<2x1xf32>
      %c0_52 = arith.constant 0 : index
      %c0_53 = arith.constant 0 : index
      %78 = vector.load %arg10[%c0_52, %c0_53] : memref<2x1xf32, #tpu.memory_space<vmem>>, vector<2x1xf32>
      %c0_54 = arith.constant 0 : index
      %c0_55 = arith.constant 0 : index
      %79 = vector.load %arg9[%c0_54, %c0_55] : memref<2x1xf32, #tpu.memory_space<vmem>>, vector<2x1xf32>
      %80 = arith.subf %79, %77 : vector<2x1xf32>
      %c0_56 = arith.constant 0 : index
      %c0_57 = arith.constant 0 : index
      %81 = vector.load %arg11[%c0_56, %c0_57] : memref<2x1xf32, #tpu.memory_space<vmem>>, vector<2x1xf32>
      %82 = arith.subf %81, %78 : vector<2x1xf32>
      %83 = arith.divf %77, %74 : vector<2x1xf32>
      %84 = arith.divf %80, %76 : vector<2x1xf32>
      %85 = arith.subf %83, %84 : vector<2x1xf32>
      %cst_58 = arith.constant 1.000000e-01 : f32
      %86 = vector.broadcast %cst_58 : f32 to vector<2x1xf32>
      %87 = arith.addf %85, %86 : vector<2x1xf32>
      %cst_59 = arith.constant 0.000000e+00 : f32
      %88 = vector.broadcast %cst_59 : f32 to vector<2x1xf32>
      %89 = arith.maximumf %87, %88 : vector<2x1xf32>
      %90 = arith.divf %78, %74 : vector<2x1xf32>
      %91 = arith.divf %82, %76 : vector<2x1xf32>
      %92 = arith.subf %90, %91 : vector<2x1xf32>
      %cst_60 = arith.constant 1.000000e-01 : f32
      %93 = vector.broadcast %cst_60 : f32 to vector<2x1xf32>
      %94 = arith.addf %92, %93 : vector<2x1xf32>
      %cst_61 = arith.constant 0.000000e+00 : f32
      %95 = vector.broadcast %cst_61 : f32 to vector<2x1xf32>
      %96 = arith.maximumf %94, %95 : vector<2x1xf32>
      %97 = arith.addf %89, %96 : vector<2x1xf32>
      %cst_62 = arith.constant dense<0.000000e+00> : vector<1xf32>
      %98 = vector.multi_reduction <add>, %97, %cst_62 [0] : vector<2x1xf32> to vector<1xf32>
      %99 = vector.shape_cast %98 : vector<1xf32> to vector<1x1xf32>
      %cst_63 = arith.constant 2.500000e-01 : f32
      %100 = vector.broadcast %cst_63 : f32 to vector<1x1xf32>
      %101 = arith.mulf %99, %100 : vector<1x1xf32>
      %c0_64 = arith.constant 0 : index
      %c0_65 = arith.constant 0 : index
      %102 = vector.load %arg6[%c0_64, %c0_65] : memref<1x1xf32, #tpu.memory_space<vmem>>, vector<1x1xf32>
      tpu.vector_store %arg6[%c0_64, %c0_65], %101 {strides = array<i32>} : memref<1x1xf32, #tpu.memory_space<vmem>>, vector<1x1xf32>,
    } else {
    }
    return
  }
  func.func @transform_0(%arg0: i32) -> (i32, i32) {
    %c0_i32 = arith.constant 0 : i32
    %c0_i32_0 = arith.constant 0 : i32
    return %c0_i32, %arg0 : i32, i32
  }
  func.func @transform_1(%arg0: i32) -> (i32, i32) {
    %c0_i32 = arith.constant 0 : i32
    %c0_i32_0 = arith.constant 0 : i32
    %c0_i32_1 = arith.constant 0 : i32
    return %c0_i32, %c0_i32_0 : i32, i32
  }
  func.func @transform_2(%arg0: i32) -> (i32, i32) {
    %c0_i32 = arith.constant 0 : i32
    %c0_i32_0 = arith.constant 0 : i32
    %c0_i32_1 = arith.constant 0 : i32
    return %c0_i32, %c0_i32_0 : i32, i32
  }
  func.func @transform_3(%arg0: i32) -> (i32, i32) {
    %c0_i32 = arith.constant 0 : i32
    %c0_i32_0 = arith.constant 0 : i32
    return %arg0, %c0_i32 : i32, i32
  }
  func.func @transform_4(%arg0: i32) -> (i32, i32) {
    %c0_i32 = arith.constant 0 : i32
    %c0_i32_0 = arith.constant 0 : i32
    return %arg0, %c0_i32 : i32, i32
  }
  func.func @transform_5(%arg0: i32) -> (i32, i32) {
    %c0_i32 = arith.constant 0 : i32
    %c0_i32_0 = arith.constant 0 : i32
    %c0_i32_1 = arith.constant 0 : i32
    return %c0_i32, %c0_i32_0 : i32, i32
  }
}

</mosaic_0001>

<llo_original>
// kernel: tpu_custom_call.1
$region0: #{tpu_custom_call.1}
  #allocation0 [shape = 'u32[]', space=smem, size = 0x4, offset = 0x4, fixed_abs, tag = 'smem constant byte address 0x4 - core index']
  #allocation1 [shape = 'u32[144,128]{1,0:T(1,128)}', space=vmem, size = 0x12000, scoped, tag = 'internal scratch']
  #allocation2 [shape = 'f32[2,1]{1,0:T(2,128)}', space=vmem, size = 0x400, scoped, tag = 'scratch operand']
  #allocation3 [shape = 'f32[2,1]{1,0:T(2,128)}', space=vmem, size = 0x400, scoped, tag = 'scratch operand']
  #allocation4 [shape = 'f32[2,1]{1,0:T(2,128)}', space=vmem, size = 0x400, scoped, tag = 'scratch operand']
  #allocation5 [shape = 'f32[2,1]{1,0:T(2,128)}', space=vmem, size = 0x400, scoped, tag = 'scratch operand']
  #allocation6 [shape = 'f32[2,1]{1,0:T(2,128)}', space=vmem, size = 0x400, scoped, tag = 'scratch operand']
  %s0 = inlined_call_operand.hbm [shape: s32[1,8], index: 0, kind: input, shape index: {}]
  %s1 = inlined_call_operand.vmem [shape: f32[2,32], index: 1, kind: input, shape index: {}]
  %s2 = inlined_call_operand.hbm [shape: f32[2,32], index: 2, kind: input, shape index: {}]
  %s3 = inlined_call_operand.vmem [shape: f32[8,32], index: 3, kind: input, shape index: {}]
  %s4 = inlined_call_operand.hbm [shape: f32[8,32], index: 4, kind: input, shape index: {}]
  %s5 = inlined_call_operand.hbm [shape: f32[1,1], index: 5, kind: output, shape index: {}]
  %s6 = sld [smem:[#allocation0]]
  $region50: #{tpu_custom_call.1} parent=0
    _
  %s8 = ssub.s32 1, %s6
  %s9 = scalar_select 0, %s8, %s6
  $region1: #{tpu_custom_call.1} parent=0
    #allocation7 [shape = 'u8[512]{0}', space=vmem, size = 0x400, scoped, tag = 'input window, operand 0, single buffered']
    #allocation8 [shape = 's32[1]{0}', space=sflag, size = 0x4, scoped, tag = 'scoped memory for tpu_custom_call.1']
    #allocation9 [shape = 's32[1]{0}', space=sflag, size = 0x4, scoped, tag = 'scoped memory for tpu_custom_call.1']
    #allocation10 [shape = 'u8[1024]{0}', space=vmem, size = 0x400, scoped, tag = 'input window, operand 2, single buffered']
    #allocation11 [shape = 's32[1]{0}', space=sflag, size = 0x4, scoped, tag = 'scoped memory for tpu_custom_call.1']
    #allocation12 [shape = 'u8[4096]{0}', space=vmem, size = 0x1000, scoped, tag = 'input window, operand 4, single buffered']
    #allocation13 [shape = 'u8[512]{0}', space=vmem, size = 0x400, scoped, tag = 'output window, operand 0, single buffered']
    %10 = vsyncpa [#allocation8], 0
    %11 = vsyncpa [#allocation11], 0
    %12 = vsyncpa [#allocation9], 0
    // Predicated region
    $region2: #{tpu_custom_call.1} parent=1 // pred_check
      _
    $region3: #{tpu_custom_call.1} parent=1 // pred_check_branch
      %14 = sbr.rel (0) target = $region5
    $region4: #{tpu_custom_call.1} parent=1 // pred_region
      %s16 = ssub.s32 16, 16
      %17 = vsyncadd [#allocation8], %s16
      %s19 = sshll.u32 [#allocation7], 4
      %s20 = int_to_ptr.vmem [resolvable:$true] %s19
      %22 = dma.hbm_to_vmem [thread:$0]  %s0, 16, %s20, [#allocation8]
    $region5: #{tpu_custom_call.1} parent=1 // pred_fallthru
      _
    // Predicated region
    $region6: #{tpu_custom_call.1} parent=1 // pred_check
      _
    $region7: #{tpu_custom_call.1} parent=1 // pred_check_branch
      %24 = sbr.rel (0) target = $region9
    $region8: #{tpu_custom_call.1} parent=1 // pred_region
      _
    $region9: #{tpu_custom_call.1} parent=1 // pred_fallthru
      _
    // Predicated region
    $region10: #{tpu_custom_call.1} parent=1 // pred_check
      _
    $region11: #{tpu_custom_call.1} parent=1 // pred_check_branch
      %26 = sbr.rel (0) target = $region13
    $region12: #{tpu_custom_call.1} parent=1 // pred_region
      %s28 = ssub.s32 32, 32
      %29 = vsyncadd [#allocation11], %s28
      %s31 = sshll.u32 [#allocation10], 4
      %s32 = int_to_ptr.vmem [resolvable:$true] %s31
      %34 = dma.hbm_to_vmem [thread:$0]  %s2, 32, %s32, [#allocation11]
    $region13: #{tpu_custom_call.1} parent=1 // pred_fallthru
      _
    // Predicated region
    $region14: #{tpu_custom_call.1} parent=1 // pred_check
      _
    $region15: #{tpu_custom_call.1} parent=1 // pred_check_branch
      %36 = sbr.rel (0) target = $region17
    $region16: #{tpu_custom_call.1} parent=1 // pred_region
      _
    $region17: #{tpu_custom_call.1} parent=1 // pred_fallthru
      _
    // Predicated region
    $region18: #{tpu_custom_call.1} parent=1 // pred_check
      _
    $region19: #{tpu_custom_call.1} parent=1 // pred_check_branch
      %38 = sbr.rel (0) target = $region21
    $region20: #{tpu_custom_call.1} parent=1 // pred_region
      %s40 = ssub.s32 128, 128
      %41 = vsyncadd [#allocation11], %s40
      %s43 = sshll.u32 [#allocation12], 4
      %s44 = int_to_ptr.vmem [resolvable:$true] %s43
      %46 = dma.hbm_to_vmem [thread:$0]  %s4, 128, %s44, [#allocation11]
    $region21: #{tpu_custom_call.1} parent=1 // pred_fallthru
      _
    // Predicated region
    $region22: #{tpu_custom_call.1} parent=1 // pred_check
      _
    $region23: #{tpu_custom_call.1} parent=1 // pred_check_branch
      %48 = sbr.rel (0) target = $region25
    $region24: #{tpu_custom_call.1} parent=1 // pred_region
      %49 = dma.done [#allocation8], 16
    $region25: #{tpu_custom_call.1} parent=1 // pred_fallthru
      _
    // Predicated region
    $region26: #{tpu_custom_call.1} parent=1 // pred_check
      _
    $region27: #{tpu_custom_call.1} parent=1 // pred_check_branch
      %51 = sbr.rel (0) target = $region29
    $region28: #{tpu_custom_call.1} parent=1 // pred_region
      %52 = dma.done [#allocation11], 32
    $region29: #{tpu_custom_call.1} parent=1 // pred_fallthru
      _
    // Predicated region
    $region30: #{tpu_custom_call.1} parent=1 // pred_check
      _
    $region31: #{tpu_custom_call.1} parent=1 // pred_check_branch
      %54 = sbr.rel (0) target = $region33
    $region32: #{tpu_custom_call.1} parent=1 // pred_region
      %55 = dma.done [#allocation11], 128
    $region33: #{tpu_custom_call.1} parent=1 // pred_fallthru
      _
    %p56 = scmp.eq.s32.totalorder 0, 0
    // Predicated region
    $region34: #{tpu_custom_call.1} parent=1 // pred_check
      %p57 = pneg %p56
    $region35: #{tpu_custom_call.1} parent=1 // pred_check_branch
      %59 = sbr.rel (%p57) target = $region37
    $region36: #{tpu_custom_call.1} parent=1 // pred_region
      %vm60 = vcmask 1024
      %61 = vst.msk [vmem:[#allocation2] sm:$0x3] %vm60, 0.0
      %62 = vst.msk [vmem:[#allocation3] sm:$0x3] %vm60, 0.0
      %63 = vst.msk [vmem:[#allocation4] sm:$0x3] %vm60, 0.0
      %64 = vst.msk [vmem:[#allocation5] sm:$0x3] %vm60, 0.0
      %65 = vst.msk [vmem:[#allocation6] sm:$0x3] %vm60, 0.0
    $region37: #{tpu_custom_call.1} parent=1 // pred_fallthru
      _
    %v66 = vld [vmem:[%s1] sm:$0x3]
    %v67 = vld [vmem:[#allocation10] sm:$0x3]
    %v68 = vld [vmem:[%s3] sm:$0xff]
    %v69 = vld [vmem:[#allocation12] sm:$0xff]
    %v70 = vld [vmem:[#allocation7] sm:$0x1]
    %v71 = vlaneseq
    %v72 = vshrl.u32 %v71, 7
    %v73 = vlaneseq
    %v74 = vshrl.u32 %v73, 7
    %v75 = vsub.s32 0, %v74
    %v76 = vrot.slane %v70, %v75
    %vm77 = vcmp.eq.s32.totalorder %v76, %v72
    %v78 = vsel %vm77, 1, 0
    %v79 = vcvt.s32.f32 %v78
    %v80 = vmul.f32 %v66, %v66
    %vm81 = vcmask 254976
    %v82 = vsel %vm81, %v80, 0.0
    %83 = vadd.xlane.f32.xlu0 %v82
    %v84 = vpop.xlane.xlu0 %83
    %v85 = vmul.f32 %v67, %v67
    %v86 = vsel %vm81, %v85, 0.0
    %87 = vadd.xlane.f32.xlu0 %v86
    %v88 = vpop.xlane.xlu0 %87
    %v89 = vmul.f32 %v68, %v68
    %vm90 = vcmask 261120
    %v92 = vsel %vm90, 1.0, 0
    %v95 = vsel %vm90, %v89, 0
    %97 = vmatprep.subr.mxu0 0.0
    %98 = vmatpush1.xpose.msra.mxu0 %v95
    %99 = vmatprep.subr.mxu0 0.0
    %100 = vmatpush1.xpose.msra.mxu0 0.0
    %101 = vmatprep.subr.mxu0 0.0
    %102 = vmatpush1.xpose.msra.mxu0 0.0
    %103 = vmatprep.subr.mxu0 0.0
    %104 = vmatpush1.xpose.msra.mxu0 0.0
    %105 = vmatprep.subr.mxu0 0.0
    %106 = vmatpush1.xpose.msra.mxu0 0.0
    %107 = vmatprep.subr.mxu0 0.0
    %108 = vmatpush1.xpose.msra.mxu0 0.0
    %109 = vmatprep.subr.mxu0 0.0
    %110 = vmatpush1.xpose.msra.mxu0 0.0
    %111 = vmatprep.subr.mxu0 0.0
    %112 = vmatpush1.xpose.msra.mxu0 0.0
    %113 = vmatprep.subr.mxu0 0.0
    %114 = vmatpush1.xpose.msra.mxu0 0.0
    %115 = vmatprep.subr.mxu0 0.0
    %116 = vmatpush1.xpose.msra.mxu0 0.0
    %117 = vmatprep.subr.mxu0 0.0
    %118 = vmatpush1.xpose.msra.mxu0 0.0
    %119 = vmatprep.subr.mxu0 0.0
    %120 = vmatpush1.xpose.msra.mxu0 0.0
    %121 = vmatprep.subr.mxu0 0.0
    %122 = vmatpush1.xpose.msra.mxu0 0.0
    %123 = vmatprep.subr.mxu0 0.0
    %124 = vmatpush1.xpose.msra.mxu0 0.0
    %125 = vmatprep.subr.mxu0 0.0
    %126 = vmatpush1.xpose.msra.mxu0 0.0
    %127 = vmatprep.subr.mxu0 0.0
    %128 = vmatpush1.xpose.msra.mxu0 0.0
    %129 = vmatprep.subr.mxu0 0.0
    %130 = vmatpush1.xpose.msra.mxu0 0.0
    %131 = vmatprep.subr.mxu0 0.0
    %132 = vmatpush1.xpose.msra.mxu0 0.0
    %133 = vmatprep.subr.mxu0 0.0
    %134 = vmatpush1.xpose.msra.mxu0 0.0
    %135 = vmatprep.subr.mxu0 0.0
    %136 = vmatpush1.xpose.msra.mxu0 0.0
    %137 = vmatprep.subr.mxu0 0.0
    %138 = vmatpush1.xpose.msra.mxu0 0.0
    %139 = vmatprep.subr.mxu0 0.0
    %140 = vmatpush1.xpose.msra.mxu0 0.0
    %141 = vmatprep.subr.mxu0 0.0
    %142 = vmatpush1.xpose.msra.mxu0 0.0
    %143 = vmatprep.subr.mxu0 0.0
    %144 = vmatpush1.xpose.msra.mxu0 0.0
    %145 = vmatprep.subr.mxu0 0.0
    %146 = vmatpush1.xpose.msra.mxu0 0.0
    %147 = vmatprep.subr.mxu0 0.0
    %148 = vmatpush1.xpose.msra.mxu0 0.0
    %149 = vmatprep.subr.mxu0 0.0
    %150 = vmatpush1.xpose.msra.mxu0 0.0
    %151 = vmatprep.subr.mxu0 0.0
    %152 = vmatpush1.xpose.msra.mxu0 0.0
    %153 = vmatprep.subr.mxu0 0.0
    %154 = vmatpush1.xpose.msra.mxu0 0.0
    %155 = vmatprep.subr.mxu0 0.0
    %156 = vmatpush1.xpose.msra.mxu0 0.0
    %157 = vmatprep.subr.mxu0 0.0
    %158 = vmatpush1.xpose.msra.mxu0 0.0
    %159 = vmatprep.subr.mxu0 0.0
    %160 = vmatpush1.xpose.msra.mxu0 0.0
    %161 = vmatprep.mubr.f32.mxu0 0.0
    %162 = vmatmul.mubr.f32.gmra.mrb[0].mxu0 %v92
    %v163 = vpop.f32.mrb[0].mxu0
    %v164 = vadd.f32 0.0, %v163
    %v165 = vpop.f32.mrb[0].mxu0
    %166 = vdwg.mxu0
    %v167 = vmul.f32 %v69, %v69
    %v169 = vsel %vm90, %v167, 0
    %171 = vmatprep.subr.mxu0 0.0
    %172 = vmatpush1.xpose.msra.mxu0 %v169
    %173 = vmatprep.subr.mxu0 0.0
    %174 = vmatpush1.xpose.msra.mxu0 0.0
    %175 = vmatprep.subr.mxu0 0.0
    %176 = vmatpush1.xpose.msra.mxu0 0.0
    %177 = vmatprep.subr.mxu0 0.0
    %178 = vmatpush1.xpose.msra.mxu0 0.0
    %179 = vmatprep.subr.mxu0 0.0
    %180 = vmatpush1.xpose.msra.mxu0 0.0
    %181 = vmatprep.subr.mxu0 0.0
    %182 = vmatpush1.xpose.msra.mxu0 0.0
    %183 = vmatprep.subr.mxu0 0.0
    %184 = vmatpush1.xpose.msra.mxu0 0.0
    %185 = vmatprep.subr.mxu0 0.0
    %186 = vmatpush1.xpose.msra.mxu0 0.0
    %187 = vmatprep.subr.mxu0 0.0
    %188 = vmatpush1.xpose.msra.mxu0 0.0
    %189 = vmatprep.subr.mxu0 0.0
    %190 = vmatpush1.xpose.msra.mxu0 0.0
    %191 = vmatprep.subr.mxu0 0.0
    %192 = vmatpush1.xpose.msra.mxu0 0.0
    %193 = vmatprep.subr.mxu0 0.0
    %194 = vmatpush1.xpose.msra.mxu0 0.0
    %195 = vmatprep.subr.mxu0 0.0
    %196 = vmatpush1.xpose.msra.mxu0 0.0
    %197 = vmatprep.subr.mxu0 0.0
    %198 = vmatpush1.xpose.msra.mxu0 0.0
    %199 = vmatprep.subr.mxu0 0.0
    %200 = vmatpush1.xpose.msra.mxu0 0.0
    %201 = vmatprep.subr.mxu0 0.0
    %202 = vmatpush1.xpose.msra.mxu0 0.0
    %203 = vmatprep.subr.mxu0 0.0
    %204 = vmatpush1.xpose.msra.mxu0 0.0
    %205 = vmatprep.subr.mxu0 0.0
    %206 = vmatpush1.xpose.msra.mxu0 0.0
    %207 = vmatprep.subr.mxu0 0.0
    %208 = vmatpush1.xpose.msra.mxu0 0.0
    %209 = vmatprep.subr.mxu0 0.0
    %210 = vmatpush1.xpose.msra.mxu0 0.0
    %211 = vmatprep.subr.mxu0 0.0
    %212 = vmatpush1.xpose.msra.mxu0 0.0
    %213 = vmatprep.subr.mxu0 0.0
    %214 = vmatpush1.xpose.msra.mxu0 0.0
    %215 = vmatprep.subr.mxu0 0.0
    %216 = vmatpush1.xpose.msra.mxu0 0.0
    %217 = vmatprep.subr.mxu0 0.0
    %218 = vmatpush1.xpose.msra.mxu0 0.0
    %219 = vmatprep.subr.mxu0 0.0
    %220 = vmatpush1.xpose.msra.mxu0 0.0
    %221 = vmatprep.subr.mxu0 0.0
    %222 = vmatpush1.xpose.msra.mxu0 0.0
    %223 = vmatprep.subr.mxu0 0.0
    %224 = vmatpush1.xpose.msra.mxu0 0.0
    %225 = vmatprep.subr.mxu0 0.0
    %226 = vmatpush1.xpose.msra.mxu0 0.0
    %227 = vmatprep.subr.mxu0 0.0
    %228 = vmatpush1.xpose.msra.mxu0 0.0
    %229 = vmatprep.subr.mxu0 0.0
    %230 = vmatpush1.xpose.msra.mxu0 0.0
    %231 = vmatprep.subr.mxu0 0.0
    %232 = vmatpush1.xpose.msra.mxu0 0.0
    %233 = vmatprep.subr.mxu0 0.0
    %234 = vmatpush1.xpose.msra.mxu0 0.0
    %235 = vmatprep.mubr.f32.mxu0 0.0
    %236 = vmatmul.mubr.f32.gmra.mrb[0].mxu0 %v92
    %v237 = vpop.f32.mrb[0].mxu0
    %v238 = vadd.f32 0.0, %v237
    %v239 = vpop.f32.mrb[0].mxu0
    %240 = vdwg.mxu0
    %v242 = vsel %vm90, %v66, 0
    %v245 = vsel %vm90, %v69, 0
    %247 = vmatprep.subr.mxu0 0.0
    %248 = vmatpush1.xpose.msra.mxu0 %v245
    %249 = vmatprep.subr.mxu0 0.0
    %250 = vmatpush1.xpose.msra.mxu0 0.0
    %251 = vmatprep.subr.mxu0 0.0
    %252 = vmatpush1.xpose.msra.mxu0 0.0
    %253 = vmatprep.subr.mxu0 0.0
    %254 = vmatpush1.xpose.msra.mxu0 0.0
    %255 = vmatprep.subr.mxu0 0.0
    %256 = vmatpush1.xpose.msra.mxu0 0.0
    %257 = vmatprep.subr.mxu0 0.0
    %258 = vmatpush1.xpose.msra.mxu0 0.0
    %259 = vmatprep.subr.mxu0 0.0
    %260 = vmatpush1.xpose.msra.mxu0 0.0
    %261 = vmatprep.subr.mxu0 0.0
    %262 = vmatpush1.xpose.msra.mxu0 0.0
    %263 = vmatprep.subr.mxu0 0.0
    %264 = vmatpush1.xpose.msra.mxu0 0.0
    %265 = vmatprep.subr.mxu0 0.0
    %266 = vmatpush1.xpose.msra.mxu0 0.0
    %267 = vmatprep.subr.mxu0 0.0
    %268 = vmatpush1.xpose.msra.mxu0 0.0
    %269 = vmatprep.subr.mxu0 0.0
    %270 = vmatpush1.xpose.msra.mxu0 0.0
    %271 = vmatprep.subr.mxu0 0.0
    %272 = vmatpush1.xpose.msra.mxu0 0.0
    %273 = vmatprep.subr.mxu0 0.0
    %274 = vmatpush1.xpose.msra.mxu0 0.0
    %275 = vmatprep.subr.mxu0 0.0
    %276 = vmatpush1.xpose.msra.mxu0 0.0
    %277 = vmatprep.subr.mxu0 0.0
    %278 = vmatpush1.xpose.msra.mxu0 0.0
    %279 = vmatprep.subr.mxu0 0.0
    %280 = vmatpush1.xpose.msra.mxu0 0.0
    %281 = vmatprep.subr.mxu0 0.0
    %282 = vmatpush1.xpose.msra.mxu0 0.0
    %283 = vmatprep.subr.mxu0 0.0
    %284 = vmatpush1.xpose.msra.mxu0 0.0
    %285 = vmatprep.subr.mxu0 0.0
    %286 = vmatpush1.xpose.msra.mxu0 0.0
    %287 = vmatprep.subr.mxu0 0.0
    %288 = vmatpush1.xpose.msra.mxu0 0.0
    %289 = vmatprep.subr.mxu0 0.0
    %290 = vmatpush1.xpose.msra.mxu0 0.0
    %291 = vmatprep.subr.mxu0 0.0
    %292 = vmatpush1.xpose.msra.mxu0 0.0
    %293 = vmatprep.subr.mxu0 0.0
    %294 = vmatpush1.xpose.msra.mxu0 0.0
    %295 = vmatprep.subr.mxu0 0.0
    %296 = vmatpush1.xpose.msra.mxu0 0.0
    %297 = vmatprep.subr.mxu0 0.0
    %298 = vmatpush1.xpose.msra.mxu0 0.0
    %299 = vmatprep.subr.mxu0 0.0
    %300 = vmatpush1.xpose.msra.mxu0 0.0
    %301 = vmatprep.subr.mxu0 0.0
    %302 = vmatpush1.xpose.msra.mxu0 0.0
    %303 = vmatprep.subr.mxu0 0.0
    %304 = vmatpush1.xpose.msra.mxu0 0.0
    %305 = vmatprep.subr.mxu0 0.0
    %306 = vmatpush1.xpose.msra.mxu0 0.0
    %307 = vmatprep.subr.mxu0 0.0
    %308 = vmatpush1.xpose.msra.mxu0 0.0
    %309 = vmatprep.subr.mxu0 0.0
    %310 = vmatpush1.xpose.msra.mxu0 0.0
    %311 = vmatprep.mubr.f32.mxu0 0.0
    %312 = vmatmul.mubr.f32.gmra.mrb[0].mxu0 %v242
    %v313 = vpop.f32.mrb[0].mxu0
    %v314 = vadd.f32 0.0, %v313
    %v315 = vpop.f32.mrb[0].mxu0
    %316 = vdwg.mxu0
    %v318 = vsel %vm90, %v67, 0
    %v321 = vsel %vm90, %v68, 0
    %323 = vmatprep.subr.mxu0 0.0
    %324 = vmatpush1.xpose.msra.mxu0 %v321
    %325 = vmatprep.subr.mxu0 0.0
    %326 = vmatpush1.xpose.msra.mxu0 0.0
    %327 = vmatprep.subr.mxu0 0.0
    %328 = vmatpush1.xpose.msra.mxu0 0.0
    %329 = vmatprep.subr.mxu0 0.0
    %330 = vmatpush1.xpose.msra.mxu0 0.0
    %331 = vmatprep.subr.mxu0 0.0
    %332 = vmatpush1.xpose.msra.mxu0 0.0
    %333 = vmatprep.subr.mxu0 0.0
    %334 = vmatpush1.xpose.msra.mxu0 0.0
    %335 = vmatprep.subr.mxu0 0.0
    %336 = vmatpush1.xpose.msra.mxu0 0.0
    %337 = vmatprep.subr.mxu0 0.0
    %338 = vmatpush1.xpose.msra.mxu0 0.0
    %339 = vmatprep.subr.mxu0 0.0
    %340 = vmatpush1.xpose.msra.mxu0 0.0
    %341 = vmatprep.subr.mxu0 0.0
    %342 = vmatpush1.xpose.msra.mxu0 0.0
    %343 = vmatprep.subr.mxu0 0.0
    %344 = vmatpush1.xpose.msra.mxu0 0.0
    %345 = vmatprep.subr.mxu0 0.0
    %346 = vmatpush1.xpose.msra.mxu0 0.0
    %347 = vmatprep.subr.mxu0 0.0
    %348 = vmatpush1.xpose.msra.mxu0 0.0
    %349 = vmatprep.subr.mxu0 0.0
    %350 = vmatpush1.xpose.msra.mxu0 0.0
    %351 = vmatprep.subr.mxu0 0.0
    %352 = vmatpush1.xpose.msra.mxu0 0.0
    %353 = vmatprep.subr.mxu0 0.0
    %354 = vmatpush1.xpose.msra.mxu0 0.0
    %355 = vmatprep.subr.mxu0 0.0
    %356 = vmatpush1.xpose.msra.mxu0 0.0
    %357 = vmatprep.subr.mxu0 0.0
    %358 = vmatpush1.xpose.msra.mxu0 0.0
    %359 = vmatprep.subr.mxu0 0.0
    %360 = vmatpush1.xpose.msra.mxu0 0.0
    %361 = vmatprep.subr.mxu0 0.0
    %362 = vmatpush1.xpose.msra.mxu0 0.0
    %363 = vmatprep.subr.mxu0 0.0
    %364 = vmatpush1.xpose.msra.mxu0 0.0
    %365 = vmatprep.subr.mxu0 0.0
    %366 = vmatpush1.xpose.msra.mxu0 0.0
    %367 = vmatprep.subr.mxu0 0.0
    %368 = vmatpush1.xpose.msra.mxu0 0.0
    %369 = vmatprep.subr.mxu0 0.0
    %370 = vmatpush1.xpose.msra.mxu0 0.0
    %371 = vmatprep.subr.mxu0 0.0
    %372 = vmatpush1.xpose.msra.mxu0 0.0
    %373 = vmatprep.subr.mxu0 0.0
    %374 = vmatpush1.xpose.msra.mxu0 0.0
    %375 = vmatprep.subr.mxu0 0.0
    %376 = vmatpush1.xpose.msra.mxu0 0.0
    %377 = vmatprep.subr.mxu0 0.0
    %378 = vmatpush1.xpose.msra.mxu0 0.0
    %379 = vmatprep.subr.mxu0 0.0
    %380 = vmatpush1.xpose.msra.mxu0 0.0
    %381 = vmatprep.subr.mxu0 0.0
    %382 = vmatpush1.xpose.msra.mxu0 0.0
    %383 = vmatprep.subr.mxu0 0.0
    %384 = vmatpush1.xpose.msra.mxu0 0.0
    %385 = vmatprep.subr.mxu0 0.0
    %386 = vmatpush1.xpose.msra.mxu0 0.0
    %387 = vmatprep.mubr.f32.mxu0 0.0
    %388 = vmatmul.mubr.f32.gmra.mrb[0].mxu0 %v318
    %v389 = vpop.f32.mrb[0].mxu0
    %v390 = vadd.f32 0.0, %v389
    %v391 = vpop.f32.mrb[0].mxu0
    %392 = vdwg.mxu0
    %v393 = vlaneseq
    %v394 = vshrl.u32 %v393, 7
    %v395 = vsub.s32 0, %v394
    %v396 = vrot.slane %v238, %v395
    %v397 = vadd.f32 %v84, %v396
    %v398 = vmul.f32 %v314, 2.0
    %v399 = vsub.f32 %v397, %v398
    %v400 = vmax.f32 %v399, 0.0
    %v401 = vrsqrt.pop %v400
    %v402 = vmul.f32 %v400, %v401
    %vm403 = vcmp.eq.f32.partialorder %v400, inf
    %v404 = vsel %vm403, %v400, %v402
    %vm405 = vcmp.eq.f32.partialorder %v400, 0.0
    %v406 = vand.u32 %v400, 2147483648
    %v407 = vsel %vm405, %v406, %v404
    %v408 = vlaneseq
    %v409 = vshrl.u32 %v408, 7
    %v410 = vsub.s32 0, %v409
    %v411 = vrot.slane %v164, %v410
    %v412 = vadd.f32 %v88, %v411
    %v413 = vmul.f32 %v390, 2.0
    %v414 = vsub.f32 %v412, %v413
    %v415 = vmax.f32 %v414, 0.0
    %v416 = vrsqrt.pop %v415
    %v417 = vmul.f32 %v415, %v416
    %vm418 = vcmp.eq.f32.partialorder %v415, inf
    %v419 = vsel %vm418, %v415, %v417
    %vm420 = vcmp.eq.f32.partialorder %v415, 0.0
    %v421 = vand.u32 %v415, 2147483648
    %v422 = vsel %vm420, %v421, %v419
    %v423 = vld [vmem:[#allocation2] sm:$0x3]
    %vm424 = vcmask 58368
    %v425 = vsel %vm424, %v79, 0.0
    %426 = vadd.xlane.f32.xlu0 %v425
    %v427 = vpop.xlane.xlu0 %426
    %v428 = vadd.f32 %v423, %v427
    %vm429 = vcmask 1024
    %430 = vst.msk [vmem:[#allocation2] sm:$0x3] %vm429, %v428
    %v431 = vld [vmem:[#allocation3] sm:$0x3]
    %v432 = vmul.f32 %v79, %v407
    %v433 = vsel %vm424, %v432, 0.0
    %434 = vadd.xlane.f32.xlu0 %v433
    %v435 = vpop.xlane.xlu0 %434
    %v436 = vadd.f32 %v431, %v435
    %437 = vst.msk [vmem:[#allocation3] sm:$0x3] %vm429, %v436
    %v438 = vld [vmem:[#allocation4] sm:$0x3]
    %v439 = vsel %vm424, %v407, 0.0
    %440 = vadd.xlane.f32.xlu0 %v439
    %v441 = vpop.xlane.xlu0 %440
    %v442 = vadd.f32 %v438, %v441
    %443 = vst.msk [vmem:[#allocation4] sm:$0x3] %vm429, %v442
    %v444 = vld [vmem:[#allocation5] sm:$0x3]
    %v445 = vmul.f32 %v79, %v422
    %v446 = vsel %vm424, %v445, 0.0
    %447 = vadd.xlane.f32.xlu0 %v446
    %v448 = vpop.xlane.xlu0 %447
    %v449 = vadd.f32 %v444, %v448
    %450 = vst.msk [vmem:[#allocation5] sm:$0x3] %vm429, %v449
    %v451 = vld [vmem:[#allocation6] sm:$0x3]
    %v452 = vsel %vm424, %v422, 0.0
    %453 = vadd.xlane.f32.xlu0 %v452
    %v454 = vpop.xlane.xlu0 %453
    %v455 = vadd.f32 %v451, %v454
    %456 = vst.msk [vmem:[#allocation6] sm:$0x3] %vm429, %v455
    // Predicated region
    $region38: #{tpu_custom_call.1} parent=1 // pred_check
      %p457 = pneg %p56
    $region39: #{tpu_custom_call.1} parent=1 // pred_check_branch
      %459 = sbr.rel (%p457) target = $region41
    $region40: #{tpu_custom_call.1} parent=1 // pred_region
      %v460 = vld [vmem:[#allocation2] sm:$0x3]
      %v461 = vsub.f32 8.0, %v460
      %v462 = vld [vmem:[#allocation3] sm:$0x3]
      %v463 = vld [vmem:[#allocation5] sm:$0x3]
      %v464 = vld [vmem:[#allocation4] sm:$0x3]
      %v465 = vsub.f32 %v464, %v462
      %v466 = vld [vmem:[#allocation6] sm:$0x3]
      %v467 = vsub.f32 %v466, %v463
      %v468 = vrcp.pop %v460
      %v469 = vmul.f32 %v462, %v468
      %v470 = vrcp.pop %v461
      %v471 = vmul.f32 %v465, %v470
      %v472 = vsub.f32 %v469, %v471
      %v473 = vadd.f32 %v472, 0.1
      %v474 = vmax.f32 %v473, 0.0
      %v475 = vmul.f32 %v463, %v468
      %v476 = vmul.f32 %v467, %v470
      %v477 = vsub.f32 %v475, %v476
      %v478 = vadd.f32 %v477, 0.1
      %v479 = vmax.f32 %v478, 0.0
      %v480 = vadd.f32 %v474, %v479
      %v481 = vsel %vm429, %v480, 0.0
      %v482 = vrot.slane %v481, 4
      %v483 = vadd.f32 %v481, %v482
      %v484 = vrot.slane %v483, 2
      %v485 = vadd.f32 %v483, %v484
      %v486 = vrot.slane %v485, 1
      %v487 = vadd.f32 %v485, %v486
      %v488 = vmul.f32 %v487, 0.25
      %vm489 = vcmask 0
      %490 = vst.msk [vmem:[#allocation13] sm:$0x1] %vm489, %v488
    $region41: #{tpu_custom_call.1} parent=1 // pred_fallthru
      _
    // Predicated region
    $region42: #{tpu_custom_call.1} parent=1 // pred_check
      _
    $region43: #{tpu_custom_call.1} parent=1 // pred_check_branch
      %492 = sbr.rel (0) target = $region45
    $region44: #{tpu_custom_call.1} parent=1 // pred_region
      %s494 = ssub.s32 16, 16
      %495 = vsyncadd [#allocation9], %s494
      %s497 = sshll.u32 [#allocation13], 4
      %s498 = int_to_ptr.vmem [resolvable:$true] %s497
      %500 = dma.vmem_to_hbm [thread:$0]  %s498, 16, %s5, [#allocation9]
    $region45: #{tpu_custom_call.1} parent=1 // pred_fallthru
      _
    // Predicated region
    $region46: #{tpu_custom_call.1} parent=1 // pred_check
      _
    $region47: #{tpu_custom_call.1} parent=1 // pred_check_branch
      %502 = sbr.rel (0) target = $region49
    $region48: #{tpu_custom_call.1} parent=1 // pred_region
      %503 = dma.done [#allocation9], 16
    $region49: #{tpu_custom_call.1} parent=1 // pred_fallthru
      _
    %504 = vsyncpa [#allocation8], 1
    %505 = vsyncpa [#allocation11], 1
    %506 = vsyncpa [#allocation9], 1

</llo_original>
